<compile_context>
chip_gen: v5e
topology: v5e:2x2
jax: 0.10.0
libtpu: 0.0.40
codegen_flags: <defaults>
</compile_context>

<pallas_src>
import functools
import math

import jax
import jax.numpy as jnp
from jax.experimental import pallas as pl
from jax.experimental.pallas import tpu as pltpu


def _cdiv(a, b):
    return -(-a // b)


def _wing_loss_kernel(*refs, w, inv_e, c, rows, tile_r, cols,
                      tiles_per_slice, total_tiles, has_mask):
    if has_mask:
        (pred_ref, target_ref, mask_ref,
         loss_out_ref, mask_out_ref, acc_loss, acc_mask) = refs
    else:
        pred_ref, target_ref, loss_out_ref, acc_loss = refs
        mask_ref = mask_out_ref = acc_mask = None

    ci = pl.program_id(0)          # "parallel" slice (megacore) axis
    ii = pl.program_id(1)          # "arbitrary" streaming axis
    tile_idx = ci * tiles_per_slice + ii

    @pl.when(ii == 0)
    def _init():
        acc_loss[...] = jnp.zeros_like(acc_loss)
        if has_mask:
            acc_mask[...] = jnp.zeros_like(acc_mask)

    # Skip clamped duplicate tiles (when total_tiles % num_slices != 0 the last
    # grid step of the last slice re-reads the final block; don't re-count it).
    @pl.when(tile_idx < total_tiles)
    def _accumulate():
        pred = pred_ref[...].astype(jnp.float32)
        target = target_ref[...].astype(jnp.float32)
        abs_diff = jnp.abs(pred - target)
        # Piecewise wing loss; 1/e folded to a constant multiply, log1p on EUP.
        loss = jnp.where(abs_diff < w,
                         w * jnp.log1p(abs_diff * inv_e),
                         abs_diff - c)
        if has_mask:
            m = mask_ref[...].astype(jnp.float32)
            loss = loss * m
        else:
            m = None

        if rows % tile_r != 0:
            # Partial last tile: rows past the real extent hold unspecified
            # data (possibly NaN/Inf).  Zero BOTH contributions via a select
            # (NaN in the unselected branch is simply discarded).
            row_ids = jax.lax.broadcasted_iota(jnp.int32, (tile_r, cols), 0)
            valid = (tile_idx * tile_r + row_ids) < rows
            loss = jnp.where(valid, loss, 0.0)
            if has_mask:
                m = jnp.where(valid, m, 0.0)

        acc_loss[...] += loss
        if has_mask:
            acc_mask[...] += m

    @pl.when(ii == pl.num_programs(1) - 1)
    def _finalize():
        loss_out_ref[...] = jnp.broadcast_to(
            jnp.sum(acc_loss[...]), loss_out_ref.shape).astype(jnp.float32)
        if has_mask:
            mask_out_ref[...] = jnp.broadcast_to(
                jnp.sum(acc_mask[...]), mask_out_ref.shape).astype(jnp.float32)


def wing_loss(pred, target, mask=None, *, w=10.0, e=2.0, reduction="mean",
              block_elems=512 * 1024):
    """Pallas implementation of WingLoss.forward(pred, target, mask)."""
    if reduction not in ("mean", "sum"):
        # TODO(synk): reduction='none' would need the full elementwise loss map
        # streamed back out of the kernel; only 'mean'/'sum' are wired up here.
        raise NotImplementedError("only 'mean' and 'sum' reductions supported")

    assert pred.shape == target.shape
    has_mask = mask is not None
    if has_mask:
        assert mask.shape == pred.shape
        if mask.dtype == jnp.bool_:
            mask = mask.astype(jnp.float32)

    c = float(w - w * math.log(1.0 + w / e))
    inv_e = float(1.0 / e)
    n = int(pred.size)

    # ---- lane-dense 2D view (zero-copy in the 128-aligned case) ------------
    cols = None
    for cand in (1024, 512, 256, 128):
        if n % cand == 0:
            cols = cand
            break
    if cols is None:
        cols = 128                  # minimal tail pad (< 128 elements per row)
    rows = _cdiv(n, cols)
    pad = rows * cols - n

    def _prep(x):
        flat = x.reshape(-1)
        if pad:
            # TODO(synk): only this path (n not a multiple of 128) materializes
            # a padded copy per input; 128-aligned inputs are pure reshapes.
            flat = jnp.pad(flat, (0, pad))
        return flat.reshape(rows, cols)

    inputs = [_prep(x) for x in ([pred, target] + ([mask] if has_mask else []))]

    itemsizes = [jnp.dtype(x.dtype).itemsize for x in inputs]
    pack = max(8, 32 // min(itemsizes))      # sublane packing of narrowest dtype

    # ~block_elems elements per input block (~2 MiB f32) amortizes the fixed
    # per-grid-step overhead; blocks span the full row width so every block DMA
    # is one contiguous HBM transfer.
    tile_r_target = max(pack, block_elems // cols)
    if rows <= tile_r_target:
        tile_r = rows                        # single row tile == full extent
    else:
        tile_r = max(pack, (tile_r_target // pack) * pack)

    total_tiles = _cdiv(rows, tile_r)
    num_slices = 2 if total_tiles >= 2 else 1   # v7x: 2 TCs; harmless on v5e/v6e
    tiles_per_slice = _cdiv(total_tiles, num_slices)

    def in_index_map(ci, ii):
        # Clamp so the (at most one) overhanging step of the last slice maps to
        # a valid block; the kernel skips its contribution with pl.when.
        return (jnp.minimum(ci * tiles_per_slice + ii, total_tiles - 1), 0)

    in_spec = pl.BlockSpec((tile_r, cols), in_index_map)
    out_spec = pl.BlockSpec((1, 8, 128), lambda ci, ii: (ci, 0, 0))
    part_shape = jax.ShapeDtypeStruct((num_slices, 8, 128), jnp.float32)

    scratch_shapes = [pltpu.VMEM((tile_r, cols), jnp.float32)]
    if has_mask:
        scratch_shapes.append(pltpu.VMEM((tile_r, cols), jnp.float32))
        out_specs = (out_spec, out_spec)
        out_shape = (part_shape, part_shape)
    else:
        out_specs = out_spec
        out_shape = part_shape

    kernel = functools.partial(
        _wing_loss_kernel, w=float(w), inv_e=inv_e, c=c, rows=rows,
        tile_r=tile_r, cols=cols, tiles_per_slice=tiles_per_slice,
        total_tiles=total_tiles, has_mask=has_mask)

    # Double-buffered input blocks + accumulators (+ tiny partial outputs).
    vmem_needed = (sum(2 * tile_r * cols * isz for isz in itemsizes)
                   + len(scratch_shapes) * tile_r * cols * 4
                   + 4 * num_slices * 8 * 128 * 4)
    vmem_limit = min(40 * 1024 * 1024,
                     max(16 * 1024 * 1024, int(vmem_needed * 1.5) + (1 << 20)))

    in_bytes = sum(int(x.size) * isz for x, isz in zip(inputs, itemsizes))
    out_bytes = (2 if has_mask else 1) * num_slices * 8 * 128 * 4
    cost = pl.CostEstimate(flops=8 * n, transcendentals=n,
                           bytes_accessed=in_bytes + out_bytes)

    outs = pl.pallas_call(
        kernel,
        grid=(num_slices, tiles_per_slice),
        in_specs=[in_spec] * len(inputs),
        out_specs=out_specs,
        out_shape=out_shape,
        scratch_shapes=scratch_shapes,
        compiler_params=pltpu.CompilerParams(
            dimension_semantics=("parallel", "arbitrary"),
            vmem_limit_bytes=vmem_limit,
        ),
        cost_estimate=cost,
    )(*inputs)

    if has_mask:
        loss_part, mask_part = outs
        loss_sum = loss_part[:, 0, 0].sum()
        mask_sum = mask_part[:, 0, 0].sum()
    else:
        loss_sum = outs[:, 0, 0].sum()
        mask_sum = jnp.float32(n)            # no mask streamed; count is static

    if reduction == "mean":
        return loss_sum / jnp.maximum(jnp.float32(1.0), mask_sum)
    return loss_sum


def _reference_wing_loss(pred, target, mask, *, w=10.0, e=2.0, reduction="mean"):
    c = w - w * math.log(1.0 + w / e)
    pred = pred.astype(jnp.float32)
    target = target.astype(jnp.float32)
    mask = mask.astype(jnp.float32)
    abs_diff = jnp.abs(pred - target)
    flag = (abs_diff < w).astype(jnp.float32)
    loss = flag * w * jnp.log(1.0 + abs_diff / e) + (1.0 - flag) * (abs_diff - c)
    loss = loss * mask
    if reduction == "mean":
        return loss.sum() / jnp.maximum(1.0, mask.sum())
    return loss.sum()


if __name__ == "__main__":
    key = jax.random.PRNGKey(0)
    k1, k2, k3, k4, k5 = jax.random.split(key, 5)

    # Case 1: facial-landmark shapes (B, 68 landmarks, xy), masked.
    # n = 544 -> tail-pad path, single (5, 128) tile, grid (1, 1).
    B, K = 4, 68
    pred = jax.random.normal(k1, (B, K, 2), dtype=jnp.float32) * 8.0
    target = jax.random.normal(k2, (B, K, 2), dtype=jnp.float32) * 8.0
    mask = (jax.random.uniform(k3, (B, K, 2)) > 0.2).astype(jnp.float32)

    out_mean = wing_loss(pred, target, mask, reduction="mean")
    out_sum = wing_loss(pred, target, mask, reduction="sum")
    out_mean, out_sum = jax.block_until_ready((out_mean, out_sum))
    ref_mean = _reference_wing_loss(pred, target, mask, reduction="mean")
    ref_sum = _reference_wing_loss(pred, target, mask, reduction="sum")
    assert jnp.allclose(out_mean, ref_mean, rtol=1e-5, atol=1e-5), (out_mean, ref_mean)
    assert jnp.allclose(out_sum, ref_sum, rtol=1e-5, atol=1e-5), (out_sum, ref_sum)

    # Case 2: maskless, 128-aligned (zero-copy path). Small block_elems forces a
    # (2 slices x 2 tiles) grid with a partial last tile AND a clamped overhang
    # step, exercising the row-validity mask and the tile-skip pl.when.
    p2 = jax.random.normal(k4, (20, 1024), dtype=jnp.float32) * 6.0
    t2 = jax.random.normal(k5, (20, 1024), dtype=jnp.float32) * 6.0
    out2 = jax.block_until_ready(
        wing_loss(p2, t2, None, reduction="mean", block_elems=8 * 1024))
    ref2 = _reference_wing_loss(p2, t2, jnp.ones_like(p2), reduction="mean")
    assert jnp.allclose(out2, ref2, rtol=1e-5, atol=1e-5), (out2, ref2)

    # Case 3: bf16 masked inputs (16-row sublane packing, partial last tile).
    p3 = (jax.random.normal(k1, (20, 1024), dtype=jnp.float32) * 6.0).astype(jnp.bfloat16)
    t3 = (jax.random.normal(k2, (20, 1024), dtype=jnp.float32) * 6.0).astype(jnp.bfloat16)
    m3 = (jax.random.uniform(k3, (20, 1024)) > 0.5).astype(jnp.bfloat16)
    out3 = jax.block_until_ready(
        wing_loss(p3, t3, m3, reduction="sum", block_elems=8 * 1024))
    ref3 = _reference_wing_loss(p3, t3, m3, reduction="sum")
    assert jnp.allclose(out3, ref3, rtol=1e-4, atol=1e-3), (out3, ref3)

    print("KERNEL_OK")
</pallas_src>

<mosaic_0001>
module attributes {stable_mosaic.version = 11 : i64} {
  func.func @_wing_loss_kernel(%arg0: i32, %arg1: i32, %arg2: memref<5x128xf32, #tpu.memory_space<vmem>>, %arg3: memref<5x128xf32, #tpu.memory_space<vmem>>, %arg4: memref<5x128xf32, #tpu.memory_space<vmem>>, %arg5: memref<1x8x128xf32, #tpu.memory_space<vmem>>, %arg6: memref<1x8x128xf32, #tpu.memory_space<vmem>>, %arg7: memref<5x128xf32, #tpu.memory_space<vmem>>, %arg8: memref<5x128xf32, #tpu.memory_space<vmem>>) attributes {dimension_semantics = [#tpu.dimension_semantics<parallel>, #tpu.dimension_semantics<arbitrary>], iteration_bounds = array<i64: 1, 1>, scalar_prefetch = 0 : i64, scratch_operands = 2 : i64, tpu.core_type = #tpu.core_type<tc>, window_params = [{transform_indices = @transform_0, window_bounds = array<i64: 5, 128>}, {transform_indices = @transform_1, window_bounds = array<i64: 5, 128>}, {transform_indices = @transform_2, window_bounds = array<i64: 5, 128>}, {transform_indices = @transform_3, window_bounds = array<i64: 1, 8, 128>}, {transform_indices = @transform_4, window_bounds = array<i64: 1, 8, 128>}]} {
    %c1_i32 = arith.constant 1 : i32
    %0 = arith.muli %arg0, %c1_i32 : i32
    %1 = arith.addi %0, %arg1 : i32
    %c0_i32 = arith.constant 0 : i32
    %2 = arith.cmpi eq, %arg1, %c0_i32 : i32
    %3 = arith.extui %2 : i1 to i32
    %c0_i32_0 = arith.constant 0 : i32
    %4 = arith.cmpi ne, %3, %c0_i32_0 : i32
    scf.if %4 {
      %cst = arith.constant 0.000000e+00 : f32
      %11 = vector.broadcast %cst : f32 to vector<5x128xf32>
      %c0 = arith.constant 0 : index
      %c0_5 = arith.constant 0 : index
      %12 = vector.load %arg7[%c0, %c0_5] : memref<5x128xf32, #tpu.memory_space<vmem>>, vector<5x128xf32>
      tpu.vector_store %arg7[%c0, %c0_5], %11 {strides = array<i32>} : memref<5x128xf32, #tpu.memory_space<vmem>>, vector<5x128xf32>,
      %cst_6 = arith.constant 0.000000e+00 : f32
      %13 = vector.broadcast %cst_6 : f32 to vector<5x128xf32>
      %c0_7 = arith.constant 0 : index
      %c0_8 = arith.constant 0 : index
      %14 = vector.load %arg8[%c0_7, %c0_8] : memref<5x128xf32, #tpu.memory_space<vmem>>, vector<5x128xf32>
      tpu.vector_store %arg8[%c0_7, %c0_8], %13 {strides = array<i32>} : memref<5x128xf32, #tpu.memory_space<vmem>>, vector<5x128xf32>,
    } else {
    }
    %c1_i32_1 = arith.constant 1 : i32
    %5 = arith.cmpi slt, %1, %c1_i32_1 : i32
    %6 = arith.extui %5 : i1 to i32
    %c0_i32_2 = arith.constant 0 : i32
    %7 = arith.cmpi ne, %6, %c0_i32_2 : i32
    scf.if %7 {
      %c0 = arith.constant 0 : index
      %c0_5 = arith.constant 0 : index
      %11 = vector.load %arg2[%c0, %c0_5] : memref<5x128xf32, #tpu.memory_space<vmem>>, vector<5x128xf32>
      %c0_6 = arith.constant 0 : index
      %c0_7 = arith.constant 0 : index
      %12 = vector.load %arg3[%c0_6, %c0_7] : memref<5x128xf32, #tpu.memory_space<vmem>>, vector<5x128xf32>
      %13 = arith.subf %11, %12 : vector<5x128xf32>
      %14 = math.absf %13 : vector<5x128xf32>
      %cst = arith.constant 1.000000e+01 : f32
      %15 = vector.broadcast %cst : f32 to vector<5x128xf32>
      %16 = arith.cmpf olt, %14, %15 : vector<5x128xf32>
      %cst_8 = arith.constant 5.000000e-01 : f32
      %17 = vector.broadcast %cst_8 : f32 to vector<5x128xf32>
      %18 = arith.mulf %14, %17 : vector<5x128xf32>
      %19 = math.log1p %18 : vector<5x128xf32>
      %cst_9 = arith.constant 1.000000e+01 : f32
      %20 = vector.broadcast %cst_9 : f32 to vector<5x128xf32>
      %21 = arith.mulf %20, %19 : vector<5x128xf32>
      %cst_10 = arith.constant -7.9175949 : f32
      %22 = vector.broadcast %cst_10 : f32 to vector<5x128xf32>
      %23 = arith.subf %14, %22 : vector<5x128xf32>
      %24 = arith.select %16, %21, %23 : vector<5x128xi1>, vector<5x128xf32>
      %c0_11 = arith.constant 0 : index
      %c0_12 = arith.constant 0 : index
      %25 = vector.load %arg4[%c0_11, %c0_12] : memref<5x128xf32, #tpu.memory_space<vmem>>, vector<5x128xf32>
      %26 = arith.mulf %24, %25 : vector<5x128xf32>
      %c0_13 = arith.constant 0 : index
      %c0_14 = arith.constant 0 : index
      %27 = vector.load %arg7[%c0_13, %c0_14] : memref<5x128xf32, #tpu.memory_space<vmem>>, vector<5x128xf32>
      %28 = arith.addf %27, %26 : vector<5x128xf32>
      %c0_15 = arith.constant 0 : index
      %c0_16 = arith.constant 0 : index
      %29 = vector.load %arg7[%c0_15, %c0_16] : memref<5x128xf32, #tpu.memory_space<vmem>>, vector<5x128xf32>
      tpu.vector_store %arg7[%c0_15, %c0_16], %28 {strides = array<i32>} : memref<5x128xf32, #tpu.memory_space<vmem>>, vector<5x128xf32>,
      %c0_17 = arith.constant 0 : index
      %c0_18 = arith.constant 0 : index
      %30 = vector.load %arg8[%c0_17, %c0_18] : memref<5x128xf32, #tpu.memory_space<vmem>>, vector<5x128xf32>
      %31 = arith.addf %30, %25 : vector<5x128xf32>
      %c0_19 = arith.constant 0 : index
      %c0_20 = arith.constant 0 : index
      %32 = vector.load %arg8[%c0_19, %c0_20] : memref<5x128xf32, #tpu.memory_space<vmem>>, vector<5x128xf32>
      tpu.vector_store %arg8[%c0_19, %c0_20], %31 {strides = array<i32>} : memref<5x128xf32, #tpu.memory_space<vmem>>, vector<5x128xf32>,
    } else {
    }
    %c0_i32_3 = arith.constant 0 : i32
    %8 = arith.cmpi eq, %arg1, %c0_i32_3 : i32
    %9 = arith.extui %8 : i1 to i32
    %c0_i32_4 = arith.constant 0 : i32
    %10 = arith.cmpi ne, %9, %c0_i32_4 : i32
    scf.if %10 {
      %c0 = arith.constant 0 : index
      %c0_5 = arith.constant 0 : index
      %11 = vector.load %arg7[%c0, %c0_5] : memref<5x128xf32, #tpu.memory_space<vmem>>, vector<5x128xf32>
      %12 = vector.shape_cast %11 : vector<5x128xf32> to vector<1x5x128xf32>
      %cst = arith.constant dense<0.000000e+00> : vector<1xf32>
      %13 = vector.multi_reduction <add>, %12, %cst [1, 2] : vector<1x5x128xf32> to vector<1xf32>
      %14 = vector.shape_cast %13 : vector<1xf32> to vector<1x1x1xf32>
      %15 = vector.extract %14[0, 0, 0] : f32 from vector<1x1x1xf32>
      %16 = vector.broadcast %15 : f32 to vector<1x8x128xf32>
      %c0_6 = arith.constant 0 : index
      %c0_7 = arith.constant 0 : index
      %c0_8 = arith.constant 0 : index
      %17 = vector.load %arg5[%c0_6, %c0_7, %c0_8] : memref<1x8x128xf32, #tpu.memory_space<vmem>>, vector<1x8x128xf32>
      tpu.vector_store %arg5[%c0_6, %c0_7, %c0_8], %16 {strides = array<i32>} : memref<1x8x128xf32, #tpu.memory_space<vmem>>, vector<1x8x128xf32>,
      %c0_9 = arith.constant 0 : index
      %c0_10 = arith.constant 0 : index
      %18 = vector.load %arg8[%c0_9, %c0_10] : memref<5x128xf32, #tpu.memory_space<vmem>>, vector<5x128xf32>
      %19 = vector.shape_cast %18 : vector<5x128xf32> to vector<1x5x128xf32>
      %cst_11 = arith.constant dense<0.000000e+00> : vector<1xf32>
      %20 = vector.multi_reduction <add>, %19, %cst_11 [1, 2] : vector<1x5x128xf32> to vector<1xf32>
      %21 = vector.shape_cast %20 : vector<1xf32> to vector<1x1x1xf32>
      %22 = vector.extract %21[0, 0, 0] : f32 from vector<1x1x1xf32>
      %23 = vector.broadcast %22 : f32 to vector<1x8x128xf32>
      %c0_12 = arith.constant 0 : index
      %c0_13 = arith.constant 0 : index
      %c0_14 = arith.constant 0 : index
      %24 = vector.load %arg6[%c0_12, %c0_13, %c0_14] : memref<1x8x128xf32, #tpu.memory_space<vmem>>, vector<1x8x128xf32>
      tpu.vector_store %arg6[%c0_12, %c0_13, %c0_14], %23 {strides = array<i32>} : memref<1x8x128xf32, #tpu.memory_space<vmem>>, vector<1x8x128xf32>,
    } else {
    }
    return
  }
  func.func @transform_0(%arg0: i32, %arg1: i32) -> (i32, i32) {
    %c1_i32 = arith.constant 1 : i32
    %0 = arith.muli %arg0, %c1_i32 : i32
    %1 = arith.addi %0, %arg1 : i32
    %c0_i32 = arith.constant 0 : i32
    %2 = arith.minsi %1, %c0_i32 : i32
    %c0_i32_0 = arith.constant 0 : i32
    %c0_i32_1 = arith.constant 0 : i32
    return %2, %c0_i32_0 : i32, i32
  }
  func.func @transform_1(%arg0: i32, %arg1: i32) -> (i32, i32) {
    %c1_i32 = arith.constant 1 : i32
    %0 = arith.muli %arg0, %c1_i32 : i32
    %1 = arith.addi %0, %arg1 : i32
    %c0_i32 = arith.constant 0 : i32
    %2 = arith.minsi %1, %c0_i32 : i32
    %c0_i32_0 = arith.constant 0 : i32
    %c0_i32_1 = arith.constant 0 : i32
    return %2, %c0_i32_0 : i32, i32
  }
  func.func @transform_2(%arg0: i32, %arg1: i32) -> (i32, i32) {
    %c1_i32 = arith.constant 1 : i32
    %0 = arith.muli %arg0, %c1_i32 : i32
    %1 = arith.addi %0, %arg1 : i32
    %c0_i32 = arith.constant 0 : i32
    %2 = arith.minsi %1, %c0_i32 : i32
    %c0_i32_0 = arith.constant 0 : i32
    %c0_i32_1 = arith.constant 0 : i32
    return %2, %c0_i32_0 : i32, i32
  }
  func.func @transform_3(%arg0: i32, %arg1: i32) -> (i32, i32, i32) {
    %c0_i32 = arith.constant 0 : i32
    %c0_i32_0 = arith.constant 0 : i32
    %c0_i32_1 = arith.constant 0 : i32
    return %arg0, %c0_i32, %c0_i32_0 : i32, i32, i32
  }
  func.func @transform_4(%arg0: i32, %arg1: i32) -> (i32, i32, i32) {
    %c0_i32 = arith.constant 0 : i32
    %c0_i32_0 = arith.constant 0 : i32
    %c0_i32_1 = arith.constant 0 : i32
    return %arg0, %c0_i32, %c0_i32_0 : i32, i32, i32
  }
}

</mosaic_0001>

<llo_original>
// kernel: tpu_custom_call.1
$region0: #{tpu_custom_call.1}
  #allocation0 [shape = 'u32[]', space=smem, size = 0x4, offset = 0x4, fixed_abs, tag = 'smem constant byte address 0x4 - core index']
  #allocation1 [shape = 'u32[72,128]{1,0:T(1,128)}', space=vmem, size = 0x9000, scoped, tag = 'internal scratch']
  #allocation2 [shape = 'f32[5,128]{1,0:T(8,128)}', space=vmem, size = 0x1000, scoped, tag = 'scratch operand']
  #allocation3 [shape = 'f32[5,128]{1,0:T(8,128)}', space=vmem, size = 0x1000, scoped, tag = 'scratch operand']
  %s0 = inlined_call_operand.hbm [shape: f32[5,128], index: 0, kind: input, shape index: {}]
  %s1 = inlined_call_operand.hbm [shape: f32[5,128], index: 1, kind: input, shape index: {}]
  %s2 = inlined_call_operand.hbm [shape: f32[5,128], index: 2, kind: input, shape index: {}]
  %s3 = inlined_call_operand.hbm [shape: f32[1,8,128], index: 3, kind: output, shape index: {0}]
  %s4 = inlined_call_operand.hbm [shape: f32[1,8,128], index: 4, kind: output, shape index: {1}]
  %5 = xla_tuple %s3, %s4
  %s6 = sld [smem:[#allocation0]]
  $region54: #{tpu_custom_call.1} parent=0
    _
  %s8 = ssub.s32 1, %s6
  %s9 = scalar_select 0, %s8, %s6
  $region1: #{tpu_custom_call.1} parent=0
    #allocation4 [shape = 'u8[4096]{0}', space=vmem, size = 0x1000, scoped, tag = 'input window, operand 0, single buffered']
    #allocation5 [shape = 's32[1]{0}', space=sflag, size = 0x4, scoped, tag = 'scoped memory for tpu_custom_call.1']
    #allocation6 [shape = 's32[1]{0}', space=sflag, size = 0x4, scoped, tag = 'scoped memory for tpu_custom_call.1']
    #allocation7 [shape = 'u8[4096]{0}', space=vmem, size = 0x1000, scoped, tag = 'input window, operand 1, single buffered']
    #allocation8 [shape = 's32[1]{0}', space=sflag, size = 0x4, scoped, tag = 'scoped memory for tpu_custom_call.1']
    #allocation9 [shape = 'u8[4096]{0}', space=vmem, size = 0x1000, scoped, tag = 'input window, operand 2, single buffered']
    #allocation10 [shape = 'u8[4096]{0}', space=vmem, size = 0x1000, scoped, tag = 'output window, operand 0, single buffered']
    #allocation11 [shape = 'u8[4096]{0}', space=vmem, size = 0x1000, scoped, tag = 'output window, operand 1, single buffered']
    #allocation12 [shape = 's32[1]{0}', space=sflag, size = 0x4, scoped, tag = 'scoped memory for tpu_custom_call.1']
    %10 = vsyncpa [#allocation5], 0
    %11 = vsyncpa [#allocation8], 0
    %12 = vsyncpa [#allocation6], 0
    %13 = vsyncpa [#allocation12], 0
    // Predicated region
    $region2: #{tpu_custom_call.1} parent=1 // pred_check
      _
    $region3: #{tpu_custom_call.1} parent=1 // pred_check_branch
      %15 = sbr.rel (0) target = $region5
    $region4: #{tpu_custom_call.1} parent=1 // pred_region
      %s16 = sadd.s32 0, 0
      %p17 = scmp.lt.s32.totalorder %s16, 0
      %s18 = scalar_select %p17, %s16, 0
      %20 = vsyncadd [#allocation5], 0
      %s21 = smul.addr %s18, 8
      %s22 = scalar_lea.hbm %s0, %s21
      %s24 = sshll.u32 %s22, 4
      %s25 = int_to_ptr.hbm [resolvable:$true] %s24
      %s26 = sshll.u32 [#allocation4], 4
      %s27 = int_to_ptr.vmem [resolvable:$true] %s26
      %29 = dma.hbm_to_vmem [thread:$0]  %s25, 128, %s27, [#allocation5]
    $region5: #{tpu_custom_call.1} parent=1 // pred_fallthru
      _
    // Predicated region
    $region6: #{tpu_custom_call.1} parent=1 // pred_check
      _
    $region7: #{tpu_custom_call.1} parent=1 // pred_check_branch
      %31 = sbr.rel (0) target = $region9
    $region8: #{tpu_custom_call.1} parent=1 // pred_region
      %s32 = sadd.s32 0, 0
      %p33 = scmp.lt.s32.totalorder %s32, 0
      %s34 = scalar_select %p33, %s32, 0
      %36 = vsyncadd [#allocation8], 0
      %s37 = smul.addr %s34, 8
      %s38 = scalar_lea.hbm %s1, %s37
      %s40 = sshll.u32 %s38, 4
      %s41 = int_to_ptr.hbm [resolvable:$true] %s40
      %s42 = sshll.u32 [#allocation7], 4
      %s43 = int_to_ptr.vmem [resolvable:$true] %s42
      %45 = dma.hbm_to_vmem [thread:$0]  %s41, 128, %s43, [#allocation8]
    $region9: #{tpu_custom_call.1} parent=1 // pred_fallthru
      _
    // Predicated region
    $region10: #{tpu_custom_call.1} parent=1 // pred_check
      _
    $region11: #{tpu_custom_call.1} parent=1 // pred_check_branch
      %47 = sbr.rel (0) target = $region13
    $region12: #{tpu_custom_call.1} parent=1 // pred_region
      %s48 = sadd.s32 0, 0
      %p49 = scmp.lt.s32.totalorder %s48, 0
      %s50 = scalar_select %p49, %s48, 0
      %52 = vsyncadd [#allocation8], 0
      %s53 = smul.addr %s50, 8
      %s54 = scalar_lea.hbm %s2, %s53
      %s56 = sshll.u32 %s54, 4
      %s57 = int_to_ptr.hbm [resolvable:$true] %s56
      %s58 = sshll.u32 [#allocation9], 4
      %s59 = int_to_ptr.vmem [resolvable:$true] %s58
      %61 = dma.hbm_to_vmem [thread:$0]  %s57, 128, %s59, [#allocation8]
    $region13: #{tpu_custom_call.1} parent=1 // pred_fallthru
      _
    // Predicated region
    $region14: #{tpu_custom_call.1} parent=1 // pred_check
      _
    $region15: #{tpu_custom_call.1} parent=1 // pred_check_branch
      %63 = sbr.rel (0) target = $region17
    $region16: #{tpu_custom_call.1} parent=1 // pred_region
      %65 = dma.done [#allocation5], 128
    $region17: #{tpu_custom_call.1} parent=1 // pred_fallthru
      _
    // Predicated region
    $region18: #{tpu_custom_call.1} parent=1 // pred_check
      _
    $region19: #{tpu_custom_call.1} parent=1 // pred_check_branch
      %67 = sbr.rel (0) target = $region21
    $region20: #{tpu_custom_call.1} parent=1 // pred_region
      %69 = dma.done [#allocation8], 128
    $region21: #{tpu_custom_call.1} parent=1 // pred_fallthru
      _
    // Predicated region
    $region22: #{tpu_custom_call.1} parent=1 // pred_check
      _
    $region23: #{tpu_custom_call.1} parent=1 // pred_check_branch
      %71 = sbr.rel (0) target = $region25
    $region24: #{tpu_custom_call.1} parent=1 // pred_region
      %73 = dma.done [#allocation8], 128
    $region25: #{tpu_custom_call.1} parent=1 // pred_fallthru
      _
    %s74 = sadd.s32 0, 0
    %p75 = scmp.lt.s32.totalorder %s74, 0
    %s76 = scalar_select %p75, %s74, 0
    %s77 = sadd.s32 0, 0
    %p78 = scmp.lt.s32.totalorder %s77, 0
    %s79 = scalar_select %p78, %s77, 0
    %s80 = sadd.s32 0, 0
    %p81 = scmp.lt.s32.totalorder %s80, 0
    %s82 = scalar_select %p81, %s80, 0
    %s83 = sadd.s32 0, 0
    %p84 = scmp.eq.s32.totalorder 0, 0
    // Predicated region
    $region26: #{tpu_custom_call.1} parent=1 // pred_check
      %p85 = pneg %p84
    $region27: #{tpu_custom_call.1} parent=1 // pred_check_branch
      %87 = sbr.rel (%p85) target = $region29
    $region28: #{tpu_custom_call.1} parent=1 // pred_region
      %88 = vst [vmem:[#allocation2] sm:$0x1f] 0.0
      %89 = vst [vmem:[#allocation3] sm:$0x1f] 0.0
    $region29: #{tpu_custom_call.1} parent=1 // pred_fallthru
      _
    %p90 = scmp.lt.s32.totalorder %s83, 1
    // Predicated region
    $region30: #{tpu_custom_call.1} parent=1 // pred_check
      %p91 = pneg %p90
    $region31: #{tpu_custom_call.1} parent=1 // pred_check_branch
      %93 = sbr.rel (%p91) target = $region33
    $region32: #{tpu_custom_call.1} parent=1 // pred_region
      %v94 = vld [vmem:[#allocation4] sm:$0x1f]
      %v95 = vld [vmem:[#allocation7] sm:$0x1f]
      %v96 = vsub.f32 %v94, %v95
      %v97 = vand.u32 2147483647, %v96
      %vm98 = vcmp.lt.f32.partialorder %v97, 10.0
      %v99 = vmul.f32 %v97, 0.5
      %v100 = vadd.f32 %v99, 1.0
      %v101 = vlog2.pop %v100
      %v102 = vmul.f32 %v101, 0.6931472
      %v103 = vmul.f32 -0.5, %v99
      %v104 = vadd.f32 %v103, 1.0
      %v105 = vmul.f32 %v104, %v99
      %v106 = vand.u32 2147483647, %v99
      %vm107 = vcmp.lt.f32.partialorder %v106, 0.0004427343
      %v108 = vsel %vm107, %v105, %v102
      %v109 = vmul.f32 %v108, 10.0
      %v110 = vsub.f32 %v97, -7.917595
      %v111 = vsel %vm98, %v109, %v110
      %v112 = vld [vmem:[#allocation9] sm:$0x1f]
      %v113 = vmul.f32 %v111, %v112
      %v114 = vld [vmem:[#allocation2] sm:$0x1f]
      %v115 = vadd.f32 %v114, %v113
      %116 = vst [vmem:[#allocation2] sm:$0x1f] %v115
      %v117 = vld [vmem:[#allocation3] sm:$0x1f]
      %v118 = vadd.f32 %v117, %v112
      %119 = vst [vmem:[#allocation3] sm:$0x1f] %v118
    $region33: #{tpu_custom_call.1} parent=1 // pred_fallthru
      _
    // Predicated region
    $region34: #{tpu_custom_call.1} parent=1 // pred_check
      %p120 = pneg %p84
    $region35: #{tpu_custom_call.1} parent=1 // pred_check_branch
      %122 = sbr.rel (%p120) target = $region37
    $region36: #{tpu_custom_call.1} parent=1 // pred_region
      %v123 = vld [vmem:[#allocation2] sm:$0x1f]
      %vm124 = vcmask 1044480
      %v125 = vsel %vm124, %v123, 0.0
      %126 = vadd.xlane.f32.xlu0 %v125
      %v127 = vpop.xlane.xlu0 %126
      %v128 = vrot.slane %v127, 4
      %v129 = vadd.f32 %v127, %v128
      %v130 = vrot.slane %v129, 2
      %v131 = vadd.f32 %v129, %v130
      %v132 = vrot.slane %v131, 1
      %v133 = vadd.f32 %v131, %v132
      %s134 = vtos %v133
      %v135 = vstv %s134
      %136 = vst [vmem:[#allocation10] sm:$0xff] %v135
      %v137 = vld [vmem:[#allocation3] sm:$0x1f]
      %v138 = vsel %vm124, %v137, 0.0
      %139 = vadd.xlane.f32.xlu0 %v138
      %v140 = vpop.xlane.xlu0 %139
      %v141 = vrot.slane %v140, 4
      %v142 = vadd.f32 %v140, %v141
      %v143 = vrot.slane %v142, 2
      %v144 = vadd.f32 %v142, %v143
      %v145 = vrot.slane %v144, 1
      %v146 = vadd.f32 %v144, %v145
      %s147 = vtos %v146
      %v148 = vstv %s147
      %149 = vst [vmem:[#allocation11] sm:$0xff] %v148
    $region37: #{tpu_custom_call.1} parent=1 // pred_fallthru
      _
    // Predicated region
    $region38: #{tpu_custom_call.1} parent=1 // pred_check
      _
    $region39: #{tpu_custom_call.1} parent=1 // pred_check_branch
      %151 = sbr.rel (0) target = $region41
    $region40: #{tpu_custom_call.1} parent=1 // pred_region
      %153 = vsyncadd [#allocation6], 0
      %s155 = sshll.u32 [#allocation10], 4
      %s156 = int_to_ptr.vmem [resolvable:$true] %s155
      %s157 = sshll.u32 %s3, 4
      %s158 = int_to_ptr.hbm [resolvable:$true] %s157
      %160 = dma.vmem_to_hbm [thread:$0]  %s156, 128, %s158, [#allocation6]
    $region41: #{tpu_custom_call.1} parent=1 // pred_fallthru
      _
    // Predicated region
    $region42: #{tpu_custom_call.1} parent=1 // pred_check
      _
    $region43: #{tpu_custom_call.1} parent=1 // pred_check_branch
      %162 = sbr.rel (0) target = $region45
    $region44: #{tpu_custom_call.1} parent=1 // pred_region
      %164 = vsyncadd [#allocation12], 0
      %s166 = sshll.u32 [#allocation11], 4
      %s167 = int_to_ptr.vmem [resolvable:$true] %s166
      %s168 = sshll.u32 %s4, 4
      %s169 = int_to_ptr.hbm [resolvable:$true] %s168
      %171 = dma.vmem_to_hbm [thread:$0]  %s167, 128, %s169, [#allocation12]
    $region45: #{tpu_custom_call.1} parent=1 // pred_fallthru
      _
    // Predicated region
    $region46: #{tpu_custom_call.1} parent=1 // pred_check
      _
    $region47: #{tpu_custom_call.1} parent=1 // pred_check_branch
      %173 = sbr.rel (0) target = $region49
    $region48: #{tpu_custom_call.1} parent=1 // pred_region
      %175 = dma.done [#allocation6], 128
    $region49: #{tpu_custom_call.1} parent=1 // pred_fallthru
      _
    // Predicated region
    $region50: #{tpu_custom_call.1} parent=1 // pred_check
      _
    $region51: #{tpu_custom_call.1} parent=1 // pred_check_branch
      %177 = sbr.rel (0) target = $region53
    $region52: #{tpu_custom_call.1} parent=1 // pred_region
      %179 = dma.done [#allocation12], 128
    $region53: #{tpu_custom_call.1} parent=1 // pred_fallthru
      _
    %180 = vsyncpa [#allocation5], 1
    %181 = vsyncpa [#allocation8], 1
    %182 = vsyncpa [#allocation6], 1
    %183 = vsyncpa [#allocation12], 1

</llo_original>
